<compile_context>
chip_gen: v5e
topology: v5e:2x2
jax: 0.10.0
libtpu: 0.0.40
codegen_flags: <defaults>
</compile_context>

<pallas_src>
import functools

import numpy as np
import jax
import jax.numpy as jnp
from jax.experimental import pallas as pl
from jax.experimental.pallas import tpu as pltpu


# ---------------------------------------------------------------------------
# Pallas kernel: one pixel tile (G whole images) of the block per grid step.
# ---------------------------------------------------------------------------
def _resblock_s2_kernel(
    p1_ref,     # (9*Cin, TN)   im2col patches of x (k=3, s=2, pad=1), compute dtype
    xs_ref,     # (Cin, TN)     x sampled on the stride-2 grid, compute dtype
    msk_ref,    # (9, TN)       0/1 boundary masks per conv2 tap, f32
    w1_ref,     # (Cout, 9*Cin) compute dtype
    b1_ref,     # (Cout, 1)     f32
    w2_ref,     # (Cout, 9*Cout) compute dtype
    b2_ref,     # (Cout, 1)     f32
    wf_ref,     # (Cout, Cin)   compute dtype
    bf_ref,     # (Cout, 1)     f32
    beta_ref,   # (Cout, 1)     f32, already reparameterized
    gamma_ref,  # (Cout, Cout)  f32, already reparameterized
    o_ref,      # (Cout, TN)    f32
    taps_ref,   # VMEM scratch (9*Cout, TN), compute dtype
    *, wo, negative_slope,
):
    f32 = jnp.float32
    cdt = taps_ref.dtype
    cout, tn = o_ref.shape

    # ---- conv1 (3x3, stride 2, pad 1) + LeakyReLU: one MXU matmul over 9*Cin
    first = jnp.dot(w1_ref[...], p1_ref[...], preferred_element_type=f32) + b1_ref[...]
    first = jnp.maximum(first, negative_slope * first)            # (Cout, TN) f32

    # ---- conv2 (3x3, stride 1, pad 1): 9 lane-rolls of `first` (XLU slot) *
    # boundary masks, staged into one (9*Cout, TN) operand -> single fused
    # large-contraction MXU matmul.
    for k in range(9):
        off = (k // 3 - 1) * wo + (k % 3 - 1)
        shifted = first if off == 0 else pltpu.roll(first, shift=(-off) % tn, axis=1)
        taps_ref[k * cout:(k + 1) * cout, :] = (
            shifted * msk_ref[k:k + 1, :]).astype(cdt)
    sec = jnp.dot(w2_ref[...], taps_ref[...], preferred_element_type=f32) + b2_ref[...]

    # ---- fea_ext (1x1 conv, stride 2) skip branch
    fea = jnp.dot(wf_ref[...], xs_ref[...], preferred_element_type=f32) + bf_ref[...]

    # ---- GDN (all f32): y / sqrt(beta + gamma @ y^2); rsqrt uses the EUP slot
    y = fea + sec
    norm = jnp.dot(gamma_ref[...], y * y, preferred_element_type=f32) + beta_ref[...]
    o_ref[...] = (y * jax.lax.rsqrt(norm)).astype(o_ref.dtype)


# ---------------------------------------------------------------------------
# Host-side helpers (shape-dependent layout plumbing only; no module FLOPs).
# ---------------------------------------------------------------------------
def _conv2_boundary_masks(ho, wo):
    """(9, Ho*Wo) 0/1 masks: mask[k, i*wo+j]=1 iff tap k of output (i,j) is in-bounds."""
    ii = np.arange(ho)[:, None]
    jj = np.arange(wo)[None, :]
    m = np.empty((9, ho, wo), np.float32)
    for k in range(9):
        oy, ox = k // 3 - 1, k % 3 - 1
        m[k] = ((ii + oy >= 0) & (ii + oy < ho) &
                (jj + ox >= 0) & (jj + ox < wo)).astype(np.float32)
    return m.reshape(9, ho * wo)


def _pick_images_per_step(batch, pix, per_col_bytes, budget_bytes=24 << 20):
    """Whole images per grid step: lane-dense (>=128 pixels) within a VMEM budget."""
    max_cols = max(pix, budget_bytes // max(per_col_bytes, 1))
    g = 1
    for cand in range(1, batch + 1):
        if batch % cand:
            continue
        if cand * pix > max_cols and cand > 1:
            break
        g = cand
        if cand * pix >= 128:
            break
    return g


def resnet_block_s2_forward(x, params, *, compute_dtype=jnp.bfloat16):
    """x: (B, Cin, H, W) float32 NCHW (as in PyTorch). Returns (B, Cout, Ho, Wo) f32."""
    B, Cin, H, W = x.shape
    Cout, _, K, _ = params["conv1_w"].shape
    pad = K // 2
    Ho = (H + 2 * pad - K) // 2 + 1
    Wo = (W + 2 * pad - K) // 2 + 1
    pix = Ho * Wo
    f32 = jnp.float32

    # ---- tile geometry: G whole images per grid step ------------------------
    c_item = np.dtype(compute_dtype).itemsize
    per_col = (2 * (9 * Cin + Cin) * c_item    # double-buffered patches + xs
               + 2 * 9 * 4                     # double-buffered masks (f32)
               + 2 * Cout * 4                  # double-buffered output (f32)
               + 9 * Cout * c_item             # taps scratch
               + 8 * Cout * 4)                 # live f32 intermediates (headroom)
    G = _pick_images_per_step(B, pix, per_col)
    T = B // G            # grid size
    TN = G * pix          # pixels (lanes) per grid step
    # TODO(synk): for large images (G == 1 and TN over the VMEM budget), add a
    # second grid axis over output rows with a one-row halo of `first` for conv2.

    # ---- layout plumbing (fused under jit) -----------------------------------
    # im2col for conv1: rows = (tap, cin), cols = (image, out_row, out_col).
    # TODO(synk): move patch extraction in-kernel (strided pl.ds on a padded x
    # tile) to avoid the 2.25x HBM expansion of wrapper-side im2col.
    xpad = jnp.pad(x, ((0, 0), (0, 0), (pad, pad), (pad, pad)))
    taps = [xpad[:, :, dy:dy + 2 * (Ho - 1) + 1:2, dx:dx + 2 * (Wo - 1) + 1:2]
            for dy in range(K) for dx in range(K)]               # each (B,Cin,Ho,Wo)
    patches = (jnp.stack(taps, axis=0)                           # (9,B,Cin,Ho,Wo)
               .transpose(0, 2, 1, 3, 4)                         # (9,Cin,B,Ho,Wo)
               .reshape(K * K * Cin, B * pix)
               .astype(compute_dtype))
    xs = (x[:, :, ::2, ::2].transpose(1, 0, 2, 3)
          .reshape(Cin, B * pix).astype(compute_dtype))
    masks = jnp.asarray(np.tile(_conv2_boundary_masks(Ho, Wo), (1, B)))  # (9, B*pix)

    # Weights in the (out, contraction) orientations the kernel expects.
    w1 = params["conv1_w"].transpose(0, 2, 3, 1).reshape(Cout, K * K * Cin).astype(compute_dtype)
    w2 = params["conv2_w"].transpose(0, 2, 3, 1).reshape(Cout, K * K * Cout).astype(compute_dtype)
    wf = params["fea_w"][:, :, 0, 0].astype(compute_dtype)
    b1 = params["conv1_b"].reshape(Cout, 1).astype(f32)
    b2 = params["conv2_b"].reshape(Cout, 1).astype(f32)
    bf = params["fea_b"].reshape(Cout, 1).astype(f32)

    # GDN reparameterization hoisted out of the kernel (parameter-only work).
    reparam_offset = 2.0 ** -18
    pedestal = reparam_offset ** 2
    beta_bound = (1e-6 + pedestal) ** 0.5
    beta_r = (jnp.maximum(params["gdn_beta"], beta_bound) ** 2
              - pedestal).reshape(Cout, 1).astype(f32)
    gamma_r = (jnp.maximum(params["gdn_gamma"], reparam_offset) ** 2
               - pedestal).astype(f32)

    kernel = functools.partial(_resblock_s2_kernel, wo=Wo, negative_slope=0.01)

    def col_spec(rows):                       # column-tiled activations
        return pl.BlockSpec((rows, TN), lambda t: (0, t))

    def full_spec(arr):                       # VMEM-resident params (constant block)
        return pl.BlockSpec(arr.shape, lambda t: (0,) * arr.ndim)

    weight_bytes = sum(int(np.prod(a.shape)) * a.dtype.itemsize
                       for a in (w1, w2, wf, b1, b2, bf, beta_r, gamma_r))
    vmem_limit = int(min(64 << 20, max(16 << 20, 2 * (weight_bytes + per_col * TN))))

    out = pl.pallas_call(
        kernel,
        out_shape=jax.ShapeDtypeStruct((T, Cout, TN), f32),
        grid=(T,),
        in_specs=[
            col_spec(K * K * Cin),            # patches
            col_spec(Cin),                    # xs
            col_spec(9),                      # conv2 boundary masks
            full_spec(w1), full_spec(b1),
            full_spec(w2), full_spec(b2),
            full_spec(wf), full_spec(bf),
            full_spec(beta_r), full_spec(gamma_r),
        ],
        out_specs=pl.BlockSpec((None, Cout, TN), lambda t: (t, 0, 0)),
        scratch_shapes=[pltpu.VMEM((K * K * Cout, TN), compute_dtype)],
        compiler_params=pltpu.CompilerParams(
            dimension_semantics=("parallel",),
            vmem_limit_bytes=vmem_limit,
        ),
    )(patches, xs, masks, w1, b1, w2, b2, wf, bf, beta_r, gamma_r)

    # (T, Cout, G*Ho*Wo) -> (B, Cout, Ho, Wo); a pure reshape when G == 1.
    out = out.reshape(T, Cout, G, Ho, Wo).transpose(0, 2, 1, 3, 4)
    return out.reshape(B, Cout, Ho, Wo)


# ---------------------------------------------------------------------------
# Parameter init (matches the PyTorch module layouts / GDN defaults) and a
# pure-JAX reference for verification.
# ---------------------------------------------------------------------------
def init_params(key, cin, cout, ksize=3):
    ks = jax.random.split(key, 6)
    s = 0.1
    reparam_offset = 2.0 ** -18
    pedestal = reparam_offset ** 2
    return {
        "conv1_w": s * jax.random.normal(ks[0], (cout, cin, ksize, ksize), jnp.float32),
        "conv1_b": s * jax.random.normal(ks[1], (cout,), jnp.float32),
        "conv2_w": s * jax.random.normal(ks[2], (cout, cout, ksize, ksize), jnp.float32),
        "conv2_b": s * jax.random.normal(ks[3], (cout,), jnp.float32),
        "fea_w": s * jax.random.normal(ks[4], (cout, cin, 1, 1), jnp.float32),
        "fea_b": s * jax.random.normal(ks[5], (cout,), jnp.float32),
        # GDN.build() defaults
        "gdn_beta": jnp.sqrt(jnp.ones((cout,), jnp.float32) + pedestal),
        "gdn_gamma": jnp.sqrt(0.1 * jnp.eye(cout, dtype=jnp.float32) + pedestal),
    }


def _ref_forward(x, params):
    def conv(inp, w, b, stride, pad):
        out = jax.lax.conv_general_dilated(
            inp, w, (stride, stride), ((pad, pad), (pad, pad)),
            dimension_numbers=("NCHW", "OIHW", "NCHW"))
        return out + b[None, :, None, None]

    first = conv(x, params["conv1_w"], params["conv1_b"], 2, 1)
    first = jnp.where(first >= 0, first, 0.01 * first)
    sec = conv(first, params["conv2_w"], params["conv2_b"], 1, 1)
    fea = conv(x, params["fea_w"], params["fea_b"], 2, 0)
    y = fea + sec
    reparam_offset = 2.0 ** -18
    pedestal = reparam_offset ** 2
    beta = jnp.maximum(params["gdn_beta"], (1e-6 + pedestal) ** 0.5) ** 2 - pedestal
    gamma = jnp.maximum(params["gdn_gamma"], reparam_offset) ** 2 - pedestal
    norm = jnp.einsum("oi,bihw->bohw", gamma, y * y) + beta[None, :, None, None]
    return y / jnp.sqrt(norm)


if __name__ == "__main__":
    B, Cin, Cout, H, W = 2, 4, 8, 16, 16
    key = jax.random.PRNGKey(0)
    kp, kx = jax.random.split(key)
    params = init_params(kp, Cin, Cout)
    x = jax.random.normal(kx, (B, Cin, H, W), jnp.float32)

    ref = _ref_forward(x, params)

    # Exact-math check: f32 MXU operands must match the reference tightly.
    fwd_f32 = jax.jit(functools.partial(resnet_block_s2_forward,
                                        compute_dtype=jnp.float32))
    out_f32 = jax.block_until_ready(fwd_f32(x, params))
    assert out_f32.shape == (B, Cout, H // 2, W // 2)
    assert bool(jnp.all(jnp.isfinite(out_f32)))
    err32 = float(jnp.max(jnp.abs(out_f32 - ref)))
    assert err32 < 1e-4, f"f32 mismatch vs reference: max abs err = {err32}"

    # Perf-default check: bf16 MXU operands, f32 accumulation / GDN.
    # Tolerance is loosened for bf16 rounding (math correctness proven above).
    fwd_bf16 = jax.jit(functools.partial(resnet_block_s2_forward,
                                         compute_dtype=jnp.bfloat16))
    out_bf16 = jax.block_until_ready(fwd_bf16(x, params))
    assert out_bf16.shape == (B, Cout, H // 2, W // 2)
    assert bool(jnp.all(jnp.isfinite(out_bf16)))
    err16 = float(jnp.max(jnp.abs(out_bf16 - ref)))
    assert err16 < 1e-1, f"bf16 mismatch vs reference: max abs err = {err16}"

    print("KERNEL_OK")
</pallas_src>

<mosaic_0001>
module attributes {stable_mosaic.version = 11 : i64} {
  func.func @_resblock_s2_kernel(%arg0: i32, %arg1: memref<36x128xf32, #tpu.memory_space<vmem>>, %arg2: memref<4x128xf32, #tpu.memory_space<vmem>>, %arg3: memref<9x128xf32, #tpu.memory_space<vmem>>, %arg4: memref<8x36xf32, #tpu.memory_space<vmem>>, %arg5: memref<8x1xf32, #tpu.memory_space<vmem>>, %arg6: memref<8x72xf32, #tpu.memory_space<vmem>>, %arg7: memref<8x1xf32, #tpu.memory_space<vmem>>, %arg8: memref<8x4xf32, #tpu.memory_space<vmem>>, %arg9: memref<8x1xf32, #tpu.memory_space<vmem>>, %arg10: memref<8x1xf32, #tpu.memory_space<vmem>>, %arg11: memref<8x8xf32, #tpu.memory_space<vmem>>, %arg12: memref<1x8x128xf32, #tpu.memory_space<vmem>>, %arg13: memref<72x128xf32, #tpu.memory_space<vmem>>) attributes {dimension_semantics = [#tpu.dimension_semantics<parallel>], iteration_bounds = array<i64: 1>, scalar_prefetch = 0 : i64, scratch_operands = 1 : i64, tpu.core_type = #tpu.core_type<tc>, window_params = [{transform_indices = @transform_0, window_bounds = array<i64: 36, 128>}, {transform_indices = @transform_1, window_bounds = array<i64: 4, 128>}, {transform_indices = @transform_2, window_bounds = array<i64: 9, 128>}, {pipeline_mode = #tpu.pipeline_mode<synchronous>, transform_indices = @transform_3, window_bounds = array<i64: 8, 36>}, {pipeline_mode = #tpu.pipeline_mode<synchronous>, transform_indices = @transform_4, window_bounds = array<i64: 8, 1>}, {pipeline_mode = #tpu.pipeline_mode<synchronous>, transform_indices = @transform_5, window_bounds = array<i64: 8, 72>}, {pipeline_mode = #tpu.pipeline_mode<synchronous>, transform_indices = @transform_6, window_bounds = array<i64: 8, 1>}, {pipeline_mode = #tpu.pipeline_mode<synchronous>, transform_indices = @transform_7, window_bounds = array<i64: 8, 4>}, {pipeline_mode = #tpu.pipeline_mode<synchronous>, transform_indices = @transform_8, window_bounds = array<i64: 8, 1>}, {pipeline_mode = #tpu.pipeline_mode<synchronous>, transform_indices = @transform_9, window_bounds = array<i64: 8, 1>}, {pipeline_mode = #tpu.pipeline_mode<synchronous>, transform_indices = @transform_10, window_bounds = array<i64: 8, 8>}, {transform_indices = @transform_11, window_bounds = array<i64: 1, 8, 128>}]} {
    %c0 = arith.constant 0 : index
    %c0_0 = arith.constant 0 : index
    %0 = vector.load %arg4[%c0, %c0_0] : memref<8x36xf32, #tpu.memory_space<vmem>>, vector<8x36xf32>
    %c0_1 = arith.constant 0 : index
    %c0_2 = arith.constant 0 : index
    %1 = vector.load %arg1[%c0_1, %c0_2] : memref<36x128xf32, #tpu.memory_space<vmem>>, vector<36x128xf32>
    %cst = arith.constant dense<0.000000e+00> : vector<8x128xf32>
    %2 = tpu.matmul %0, %1, %cst {dimension_numbers = #tpu.dot_dimension_numbers<[1], [0], [0], [1], [0, 0, 1, 1], [], []>} : vector<8x36xf32>, vector<36x128xf32>, vector<8x128xf32> -> vector<8x128xf32>
    %c0_3 = arith.constant 0 : index
    %c0_4 = arith.constant 0 : index
    %3 = vector.load %arg5[%c0_3, %c0_4] : memref<8x1xf32, #tpu.memory_space<vmem>>, vector<8x1xf32>
    %4 = vector.broadcast %3 : vector<8x1xf32> to vector<8x128xf32>
    %5 = arith.addf %2, %4 : vector<8x128xf32>
    %cst_5 = arith.constant 0.00999999977 : f32
    %6 = vector.broadcast %cst_5 : f32 to vector<8x128xf32>
    %7 = arith.mulf %6, %5 : vector<8x128xf32>
    %8 = arith.maximumf %5, %7 : vector<8x128xf32>
    %c9_i32 = arith.constant 9 : i32
    %9 = tpu.dynamic_rotate %8 by %c9_i32 dim 1 : vector<8x128xf32>, i32 -> vector<8x128xf32>
    %c0_6 = arith.constant 0 : index
    %c0_7 = arith.constant 0 : index
    %10 = vector.load %arg3[%c0_6, %c0_7] : memref<9x128xf32, #tpu.memory_space<vmem>>, vector<1x128xf32>
    %11 = vector.broadcast %10 : vector<1x128xf32> to vector<8x128xf32>
    %12 = arith.mulf %9, %11 : vector<8x128xf32>
    %c0_8 = arith.constant 0 : index
    %c0_9 = arith.constant 0 : index
    %13 = vector.load %arg13[%c0_8, %c0_9] : memref<72x128xf32, #tpu.memory_space<vmem>>, vector<8x128xf32>
    tpu.vector_store %arg13[%c0_8, %c0_9], %12 {strides = array<i32>} : memref<72x128xf32, #tpu.memory_space<vmem>>, vector<8x128xf32>,
    %c8_i32 = arith.constant 8 : i32
    %14 = tpu.dynamic_rotate %8 by %c8_i32 dim 1 : vector<8x128xf32>, i32 -> vector<8x128xf32>
    %c1 = arith.constant 1 : index
    %c0_10 = arith.constant 0 : index
    %15 = vector.load %arg3[%c1, %c0_10] : memref<9x128xf32, #tpu.memory_space<vmem>>, vector<1x128xf32>
    %16 = vector.broadcast %15 : vector<1x128xf32> to vector<8x128xf32>
    %17 = arith.mulf %14, %16 : vector<8x128xf32>
    %c8 = arith.constant 8 : index
    %c0_11 = arith.constant 0 : index
    %18 = vector.load %arg13[%c8, %c0_11] : memref<72x128xf32, #tpu.memory_space<vmem>>, vector<8x128xf32>
    tpu.vector_store %arg13[%c8, %c0_11], %17 {strides = array<i32>} : memref<72x128xf32, #tpu.memory_space<vmem>>, vector<8x128xf32>,
    %c7_i32 = arith.constant 7 : i32
    %19 = tpu.dynamic_rotate %8 by %c7_i32 dim 1 : vector<8x128xf32>, i32 -> vector<8x128xf32>
    %c2 = arith.constant 2 : index
    %c0_12 = arith.constant 0 : index
    %20 = vector.load %arg3[%c2, %c0_12] : memref<9x128xf32, #tpu.memory_space<vmem>>, vector<1x128xf32>
    %21 = vector.broadcast %20 : vector<1x128xf32> to vector<8x128xf32>
    %22 = arith.mulf %19, %21 : vector<8x128xf32>
    %c16 = arith.constant 16 : index
    %c0_13 = arith.constant 0 : index
    %23 = vector.load %arg13[%c16, %c0_13] : memref<72x128xf32, #tpu.memory_space<vmem>>, vector<8x128xf32>
    tpu.vector_store %arg13[%c16, %c0_13], %22 {strides = array<i32>} : memref<72x128xf32, #tpu.memory_space<vmem>>, vector<8x128xf32>,
    %c1_i32 = arith.constant 1 : i32
    %24 = tpu.dynamic_rotate %8 by %c1_i32 dim 1 : vector<8x128xf32>, i32 -> vector<8x128xf32>
    %c3 = arith.constant 3 : index
    %c0_14 = arith.constant 0 : index
    %25 = vector.load %arg3[%c3, %c0_14] : memref<9x128xf32, #tpu.memory_space<vmem>>, vector<1x128xf32>
    %26 = vector.broadcast %25 : vector<1x128xf32> to vector<8x128xf32>
    %27 = arith.mulf %24, %26 : vector<8x128xf32>
    %c24 = arith.constant 24 : index
    %c0_15 = arith.constant 0 : index
    %28 = vector.load %arg13[%c24, %c0_15] : memref<72x128xf32, #tpu.memory_space<vmem>>, vector<8x128xf32>
    tpu.vector_store %arg13[%c24, %c0_15], %27 {strides = array<i32>} : memref<72x128xf32, #tpu.memory_space<vmem>>, vector<8x128xf32>,
    %c4 = arith.constant 4 : index
    %c0_16 = arith.constant 0 : index
    %29 = vector.load %arg3[%c4, %c0_16] : memref<9x128xf32, #tpu.memory_space<vmem>>, vector<1x128xf32>
    %30 = vector.broadcast %29 : vector<1x128xf32> to vector<8x128xf32>
    %31 = arith.mulf %8, %30 : vector<8x128xf32>
    %c32 = arith.constant 32 : index
    %c0_17 = arith.constant 0 : index
    %32 = vector.load %arg13[%c32, %c0_17] : memref<72x128xf32, #tpu.memory_space<vmem>>, vector<8x128xf32>
    tpu.vector_store %arg13[%c32, %c0_17], %31 {strides = array<i32>} : memref<72x128xf32, #tpu.memory_space<vmem>>, vector<8x128xf32>,
    %c127_i32 = arith.constant 127 : i32
    %33 = tpu.dynamic_rotate %8 by %c127_i32 dim 1 : vector<8x128xf32>, i32 -> vector<8x128xf32>
    %c5 = arith.constant 5 : index
    %c0_18 = arith.constant 0 : index
    %34 = vector.load %arg3[%c5, %c0_18] : memref<9x128xf32, #tpu.memory_space<vmem>>, vector<1x128xf32>
    %35 = vector.broadcast %34 : vector<1x128xf32> to vector<8x128xf32>
    %36 = arith.mulf %33, %35 : vector<8x128xf32>
    %c40 = arith.constant 40 : index
    %c0_19 = arith.constant 0 : index
    %37 = vector.load %arg13[%c40, %c0_19] : memref<72x128xf32, #tpu.memory_space<vmem>>, vector<8x128xf32>
    tpu.vector_store %arg13[%c40, %c0_19], %36 {strides = array<i32>} : memref<72x128xf32, #tpu.memory_space<vmem>>, vector<8x128xf32>,
    %c121_i32 = arith.constant 121 : i32
    %38 = tpu.dynamic_rotate %8 by %c121_i32 dim 1 : vector<8x128xf32>, i32 -> vector<8x128xf32>
    %c6 = arith.constant 6 : index
    %c0_20 = arith.constant 0 : index
    %39 = vector.load %arg3[%c6, %c0_20] : memref<9x128xf32, #tpu.memory_space<vmem>>, vector<1x128xf32>
    %40 = vector.broadcast %39 : vector<1x128xf32> to vector<8x128xf32>
    %41 = arith.mulf %38, %40 : vector<8x128xf32>
    %c48 = arith.constant 48 : index
    %c0_21 = arith.constant 0 : index
    %42 = vector.load %arg13[%c48, %c0_21] : memref<72x128xf32, #tpu.memory_space<vmem>>, vector<8x128xf32>
    tpu.vector_store %arg13[%c48, %c0_21], %41 {strides = array<i32>} : memref<72x128xf32, #tpu.memory_space<vmem>>, vector<8x128xf32>,
    %c120_i32 = arith.constant 120 : i32
    %43 = tpu.dynamic_rotate %8 by %c120_i32 dim 1 : vector<8x128xf32>, i32 -> vector<8x128xf32>
    %c7 = arith.constant 7 : index
    %c0_22 = arith.constant 0 : index
    %44 = vector.load %arg3[%c7, %c0_22] : memref<9x128xf32, #tpu.memory_space<vmem>>, vector<1x128xf32>
    %45 = vector.broadcast %44 : vector<1x128xf32> to vector<8x128xf32>
    %46 = arith.mulf %43, %45 : vector<8x128xf32>
    %c56 = arith.constant 56 : index
    %c0_23 = arith.constant 0 : index
    %47 = vector.load %arg13[%c56, %c0_23] : memref<72x128xf32, #tpu.memory_space<vmem>>, vector<8x128xf32>
    tpu.vector_store %arg13[%c56, %c0_23], %46 {strides = array<i32>} : memref<72x128xf32, #tpu.memory_space<vmem>>, vector<8x128xf32>,
    %c119_i32 = arith.constant 119 : i32
    %48 = tpu.dynamic_rotate %8 by %c119_i32 dim 1 : vector<8x128xf32>, i32 -> vector<8x128xf32>
    %c8_24 = arith.constant 8 : index
    %c0_25 = arith.constant 0 : index
    %49 = vector.load %arg3[%c8_24, %c0_25] : memref<9x128xf32, #tpu.memory_space<vmem>>, vector<1x128xf32>
    %50 = vector.broadcast %49 : vector<1x128xf32> to vector<8x128xf32>
    %51 = arith.mulf %48, %50 : vector<8x128xf32>
    %c64 = arith.constant 64 : index
    %c0_26 = arith.constant 0 : index
    %52 = vector.load %arg13[%c64, %c0_26] : memref<72x128xf32, #tpu.memory_space<vmem>>, vector<8x128xf32>
    tpu.vector_store %arg13[%c64, %c0_26], %51 {strides = array<i32>} : memref<72x128xf32, #tpu.memory_space<vmem>>, vector<8x128xf32>,
    %c0_27 = arith.constant 0 : index
    %c0_28 = arith.constant 0 : index
    %53 = vector.load %arg6[%c0_27, %c0_28] : memref<8x72xf32, #tpu.memory_space<vmem>>, vector<8x72xf32>
    %c0_29 = arith.constant 0 : index
    %c0_30 = arith.constant 0 : index
    %54 = vector.load %arg13[%c0_29, %c0_30] : memref<72x128xf32, #tpu.memory_space<vmem>>, vector<72x128xf32>
    %cst_31 = arith.constant dense<0.000000e+00> : vector<8x128xf32>
    %55 = tpu.matmul %53, %54, %cst_31 {dimension_numbers = #tpu.dot_dimension_numbers<[1], [0], [0], [1], [0, 0, 1, 1], [], []>} : vector<8x72xf32>, vector<72x128xf32>, vector<8x128xf32> -> vector<8x128xf32>
    %c0_32 = arith.constant 0 : index
    %c0_33 = arith.constant 0 : index
    %56 = vector.load %arg7[%c0_32, %c0_33] : memref<8x1xf32, #tpu.memory_space<vmem>>, vector<8x1xf32>
    %57 = vector.broadcast %56 : vector<8x1xf32> to vector<8x128xf32>
    %58 = arith.addf %55, %57 : vector<8x128xf32>
    %c0_34 = arith.constant 0 : index
    %c0_35 = arith.constant 0 : index
    %59 = vector.load %arg8[%c0_34, %c0_35] : memref<8x4xf32, #tpu.memory_space<vmem>>, vector<8x4xf32>
    %c0_36 = arith.constant 0 : index
    %c0_37 = arith.constant 0 : index
    %60 = vector.load %arg2[%c0_36, %c0_37] : memref<4x128xf32, #tpu.memory_space<vmem>>, vector<4x128xf32>
    %cst_38 = arith.constant dense<0.000000e+00> : vector<8x128xf32>
    %61 = tpu.matmul %59, %60, %cst_38 {dimension_numbers = #tpu.dot_dimension_numbers<[1], [0], [0], [1], [0, 0, 1, 1], [], []>} : vector<8x4xf32>, vector<4x128xf32>, vector<8x128xf32> -> vector<8x128xf32>
    %c0_39 = arith.constant 0 : index
    %c0_40 = arith.constant 0 : index
    %62 = vector.load %arg9[%c0_39, %c0_40] : memref<8x1xf32, #tpu.memory_space<vmem>>, vector<8x1xf32>
    %63 = vector.broadcast %62 : vector<8x1xf32> to vector<8x128xf32>
    %64 = arith.addf %61, %63 : vector<8x128xf32>
    %65 = arith.addf %64, %58 : vector<8x128xf32>
    %c0_41 = arith.constant 0 : index
    %c0_42 = arith.constant 0 : index
    %66 = vector.load %arg11[%c0_41, %c0_42] : memref<8x8xf32, #tpu.memory_space<vmem>>, vector<8x8xf32>
    %67 = arith.mulf %65, %65 : vector<8x128xf32>
    %cst_43 = arith.constant dense<0.000000e+00> : vector<8x128xf32>
    %68 = tpu.matmul %66, %67, %cst_43 {dimension_numbers = #tpu.dot_dimension_numbers<[1], [0], [0], [1], [0, 0, 1, 1], [], []>} : vector<8x8xf32>, vector<8x128xf32>, vector<8x128xf32> -> vector<8x128xf32>
    %c0_44 = arith.constant 0 : index
    %c0_45 = arith.constant 0 : index
    %69 = vector.load %arg10[%c0_44, %c0_45] : memref<8x1xf32, #tpu.memory_space<vmem>>, vector<8x1xf32>
    %70 = vector.broadcast %69 : vector<8x1xf32> to vector<8x128xf32>
    %71 = arith.addf %68, %70 : vector<8x128xf32>
    %72 = math.rsqrt %71 : vector<8x128xf32>
    %73 = arith.mulf %65, %72 : vector<8x128xf32>
    %c0_46 = arith.constant 0 : index
    %c0_47 = arith.constant 0 : index
    %c0_48 = arith.constant 0 : index
    %74 = vector.load %arg12[%c0_46, %c0_47, %c0_48] : memref<1x8x128xf32, #tpu.memory_space<vmem>>, vector<1x8x128xf32>
    %75 = vector.shape_cast %74 : vector<1x8x128xf32> to vector<8x128xf32>
    %76 = vector.shape_cast %73 : vector<8x128xf32> to vector<1x8x128xf32>
    tpu.vector_store %arg12[%c0_46, %c0_47, %c0_48], %76 {strides = array<i32>} : memref<1x8x128xf32, #tpu.memory_space<vmem>>, vector<1x8x128xf32>,
    return
  }
  func.func @transform_0(%arg0: i32) -> (i32, i32) {
    %c0_i32 = arith.constant 0 : i32
    %c0_i32_0 = arith.constant 0 : i32
    return %c0_i32, %arg0 : i32, i32
  }
  func.func @transform_1(%arg0: i32) -> (i32, i32) {
    %c0_i32 = arith.constant 0 : i32
    %c0_i32_0 = arith.constant 0 : i32
    return %c0_i32, %arg0 : i32, i32
  }
  func.func @transform_2(%arg0: i32) -> (i32, i32) {
    %c0_i32 = arith.constant 0 : i32
    %c0_i32_0 = arith.constant 0 : i32
    return %c0_i32, %arg0 : i32, i32
  }
  func.func @transform_3(%arg0: i32) -> (i32, i32) {
    %c0_i32 = arith.constant 0 : i32
    %c0_i32_0 = arith.constant 0 : i32
    %c0_i32_1 = arith.constant 0 : i32
    return %c0_i32, %c0_i32_0 : i32, i32
  }
  func.func @transform_4(%arg0: i32) -> (i32, i32) {
    %c0_i32 = arith.constant 0 : i32
    %c0_i32_0 = arith.constant 0 : i32
    %c0_i32_1 = arith.constant 0 : i32
    return %c0_i32, %c0_i32_0 : i32, i32
  }
  func.func @transform_5(%arg0: i32) -> (i32, i32) {
    %c0_i32 = arith.constant 0 : i32
    %c0_i32_0 = arith.constant 0 : i32
    %c0_i32_1 = arith.constant 0 : i32
    return %c0_i32, %c0_i32_0 : i32, i32
  }
  func.func @transform_6(%arg0: i32) -> (i32, i32) {
    %c0_i32 = arith.constant 0 : i32
    %c0_i32_0 = arith.constant 0 : i32
    %c0_i32_1 = arith.constant 0 : i32
    return %c0_i32, %c0_i32_0 : i32, i32
  }
  func.func @transform_7(%arg0: i32) -> (i32, i32) {
    %c0_i32 = arith.constant 0 : i32
    %c0_i32_0 = arith.constant 0 : i32
    %c0_i32_1 = arith.constant 0 : i32
    return %c0_i32, %c0_i32_0 : i32, i32
  }
  func.func @transform_8(%arg0: i32) -> (i32, i32) {
    %c0_i32 = arith.constant 0 : i32
    %c0_i32_0 = arith.constant 0 : i32
    %c0_i32_1 = arith.constant 0 : i32
    return %c0_i32, %c0_i32_0 : i32, i32
  }
  func.func @transform_9(%arg0: i32) -> (i32, i32) {
    %c0_i32 = arith.constant 0 : i32
    %c0_i32_0 = arith.constant 0 : i32
    %c0_i32_1 = arith.constant 0 : i32
    return %c0_i32, %c0_i32_0 : i32, i32
  }
  func.func @transform_10(%arg0: i32) -> (i32, i32) {
    %c0_i32 = arith.constant 0 : i32
    %c0_i32_0 = arith.constant 0 : i32
    %c0_i32_1 = arith.constant 0 : i32
    return %c0_i32, %c0_i32_0 : i32, i32
  }
  func.func @transform_11(%arg0: i32) -> (i32, i32, i32) {
    %c0_i32 = arith.constant 0 : i32
    %c0_i32_0 = arith.constant 0 : i32
    %c0_i32_1 = arith.constant 0 : i32
    return %arg0, %c0_i32, %c0_i32_0 : i32, i32, i32
  }
}

</mosaic_0001>

<llo_original>
// kernel: resnet_block_s2_forward.1
$region0: #{resnet_block_s2_forward.1}
  #allocation0 [shape = 'u32[]', space=smem, size = 0x4, offset = 0x4, fixed_abs, tag = 'smem constant byte address 0x4 - core index']
  #allocation1 [shape = 'u32[72,128]{1,0:T(1,128)}', space=vmem, size = 0x9000, scoped, tag = 'internal scratch']
  #allocation2 [shape = 'f32[72,128]{1,0:T(8,128)}', space=vmem, size = 0x9000, scoped, tag = 'scratch operand']
  %s0 = inlined_call_operand.vmem [shape: f32[36,128], index: 0, kind: input, shape index: {}]
  %s1 = inlined_call_operand.vmem [shape: f32[4,128], index: 1, kind: input, shape index: {}]
  %s2 = inlined_call_operand.vmem [shape: f32[9,128], index: 2, kind: input, shape index: {}]
  %s3 = inlined_call_operand.vmem [shape: f32[8,36], index: 3, kind: input, shape index: {}]
  %s4 = inlined_call_operand.vmem [shape: f32[8,1], index: 4, kind: input, shape index: {}]
  %s5 = inlined_call_operand.vmem [shape: f32[8,72], index: 5, kind: input, shape index: {}]
  %s6 = inlined_call_operand.vmem [shape: f32[8,1], index: 6, kind: input, shape index: {}]
  %s7 = inlined_call_operand.vmem [shape: f32[8,4], index: 7, kind: input, shape index: {}]
  %s8 = inlined_call_operand.vmem [shape: f32[8,1], index: 8, kind: input, shape index: {}]
  %s9 = inlined_call_operand.vmem [shape: f32[8,1], index: 9, kind: input, shape index: {}]
  %s10 = inlined_call_operand.vmem [shape: f32[8,8], index: 10, kind: input, shape index: {}]
  %s11 = inlined_call_operand.vmem [shape: f32[1,8,128], index: 11, kind: output, shape index: {}]
  %s12 = sld [smem:[#allocation0]]
  $region54: #{resnet_block_s2_forward.1} parent=0
    _
  %s14 = ssub.s32 1, %s12
  %s15 = scalar_select 0, %s14, %s12
  // Predicated region
  $region2: #{resnet_block_s2_forward.1} parent=0 // pred_check
    _
  $region3: #{resnet_block_s2_forward.1} parent=0 // pred_check_branch
    %17 = sbr.rel (0) target = $region5
  $region4: #{resnet_block_s2_forward.1} parent=0 // pred_region
    _
  $region5: #{resnet_block_s2_forward.1} parent=0 // pred_fallthru
    _
  // Predicated region
  $region6: #{resnet_block_s2_forward.1} parent=0 // pred_check
    _
  $region7: #{resnet_block_s2_forward.1} parent=0 // pred_check_branch
    %19 = sbr.rel (0) target = $region9
  $region8: #{resnet_block_s2_forward.1} parent=0 // pred_region
    _
  $region9: #{resnet_block_s2_forward.1} parent=0 // pred_fallthru
    _
  // Predicated region
  $region10: #{resnet_block_s2_forward.1} parent=0 // pred_check
    _
  $region11: #{resnet_block_s2_forward.1} parent=0 // pred_check_branch
    %21 = sbr.rel (0) target = $region13
  $region12: #{resnet_block_s2_forward.1} parent=0 // pred_region
    _
  $region13: #{resnet_block_s2_forward.1} parent=0 // pred_fallthru
    _
  // Predicated region
  $region14: #{resnet_block_s2_forward.1} parent=0 // pred_check
    _
  $region15: #{resnet_block_s2_forward.1} parent=0 // pred_check_branch
    %23 = sbr.rel (0) target = $region17
  $region16: #{resnet_block_s2_forward.1} parent=0 // pred_region
    _
  $region17: #{resnet_block_s2_forward.1} parent=0 // pred_fallthru
    _
  // Predicated region
  $region18: #{resnet_block_s2_forward.1} parent=0 // pred_check
    _
  $region19: #{resnet_block_s2_forward.1} parent=0 // pred_check_branch
    %25 = sbr.rel (0) target = $region21
  $region20: #{resnet_block_s2_forward.1} parent=0 // pred_region
    _
  $region21: #{resnet_block_s2_forward.1} parent=0 // pred_fallthru
    _
  // Predicated region
  $region22: #{resnet_block_s2_forward.1} parent=0 // pred_check
    _
  $region23: #{resnet_block_s2_forward.1} parent=0 // pred_check_branch
    %27 = sbr.rel (0) target = $region25
  $region24: #{resnet_block_s2_forward.1} parent=0 // pred_region
    _
  $region25: #{resnet_block_s2_forward.1} parent=0 // pred_fallthru
    _
  // Predicated region
  $region26: #{resnet_block_s2_forward.1} parent=0 // pred_check
    _
  $region27: #{resnet_block_s2_forward.1} parent=0 // pred_check_branch
    %29 = sbr.rel (0) target = $region29
  $region28: #{resnet_block_s2_forward.1} parent=0 // pred_region
    _
  $region29: #{resnet_block_s2_forward.1} parent=0 // pred_fallthru
    _
  // Predicated region
  $region30: #{resnet_block_s2_forward.1} parent=0 // pred_check
    _
  $region31: #{resnet_block_s2_forward.1} parent=0 // pred_check_branch
    %31 = sbr.rel (0) target = $region33
  $region32: #{resnet_block_s2_forward.1} parent=0 // pred_region
    _
  $region33: #{resnet_block_s2_forward.1} parent=0 // pred_fallthru
    _
  // Predicated region
  $region34: #{resnet_block_s2_forward.1} parent=0 // pred_check
    _
  $region35: #{resnet_block_s2_forward.1} parent=0 // pred_check_branch
    %33 = sbr.rel (0) target = $region37
  $region36: #{resnet_block_s2_forward.1} parent=0 // pred_region
    _
  $region37: #{resnet_block_s2_forward.1} parent=0 // pred_fallthru
    _
  // Predicated region
  $region38: #{resnet_block_s2_forward.1} parent=0 // pred_check
    _
  $region39: #{resnet_block_s2_forward.1} parent=0 // pred_check_branch
    %35 = sbr.rel (0) target = $region41
  $region40: #{resnet_block_s2_forward.1} parent=0 // pred_region
    _
  $region41: #{resnet_block_s2_forward.1} parent=0 // pred_fallthru
    _
  // Predicated region
  $region42: #{resnet_block_s2_forward.1} parent=0 // pred_check
    _
  $region43: #{resnet_block_s2_forward.1} parent=0 // pred_check_branch
    %37 = sbr.rel (0) target = $region45
  $region44: #{resnet_block_s2_forward.1} parent=0 // pred_region
    _
  $region45: #{resnet_block_s2_forward.1} parent=0 // pred_fallthru
    _
  %v38 = vld [vmem:[%s3] sm:$0xff]
  %v39 = vld [vmem:[%s0] sm:$0xff]
  %v40 = vld [vmem:[%s0 + $0x8] sm:$0xff]
  %v41 = vld [vmem:[%s0 + $0x10] sm:$0xff]
  %v42 = vld [vmem:[%s0 + $0x18] sm:$0xff]
  %v43 = vld [vmem:[%s0 + $0x20] sm:$0xf]
  %v44 = vld [vmem:[%s4] sm:$0xff]
  %46 = vset.pattern.permute.xlu0 0
  %47 = vperm.xlu0 %46, %v44
  %v48 = vpop.permute.xlu0 %47
  %vm50 = vcmask 293888
  %v52 = vsel %vm50, %v38, 0
  %vm54 = vcmask 1043456
  %v56 = vsel %vm54, %v43, 0
  %58 = vmatpush.msra.mxu0 0.0
  %59 = vmatpush.msra.mxu0 0.0
  %60 = vmatpush.msra.mxu0 0.0
  %61 = vmatpush.msra.mxu0 0.0
  %62 = vmatpush.msra.mxu0 0.0
  %63 = vmatpush.msra.mxu0 0.0
  %64 = vmatpush.msra.mxu0 0.0
  %65 = vmatpush.msra.mxu0 0.0
  %66 = vmatpush.msra.mxu0 0.0
  %67 = vmatpush.msra.mxu0 0.0
  %68 = vmatpush.msra.mxu0 0.0
  %69 = vmatpush.msra.mxu0 %v56
  %70 = vmatpush.msra.mxu0 %v42
  %71 = vmatpush.msra.mxu0 %v41
  %72 = vmatpush.msra.mxu0 %v40
  %73 = vmatpush.msra.mxu0 %v39
  %74 = vmatmul.f32.gmra.mxu0 %v52
  %v75 = vpop.f32.mrf.mxu0
  %v76 = vadd.f32 %v48, %v75
  %77 = vdwg.mxu0
  %v78 = vmul.f32 %v76, 0.01
  %v79 = vmax.f32 %v76, %v78
  %80 = vrot.lane.b32.xlu0 %v79, 9
  %v81 = vpop.permute.xlu0 %80
  %v82 = vld [vmem:[%s2] sm:$0x1]
  %v83 = vperm.slane %v82, 0
  %v84 = vmul.f32 %v81, %v83
  %85 = vst [vmem:[#allocation2] sm:$0xff] %v84
  %86 = vrot.lane.b32.xlu0 %v79, 8
  %v87 = vpop.permute.xlu0 %86
  %v88 = vld [vmem:[%s2 + $0x1] sm:$0x1]
  %v89 = vperm.slane %v88, 0
  %v90 = vmul.f32 %v87, %v89
  %91 = vst [vmem:[#allocation2 + $0x8] sm:$0xff] %v90
  %92 = vrot.lane.b32.xlu0 %v79, 7
  %v93 = vpop.permute.xlu0 %92
  %v94 = vld [vmem:[%s2 + $0x2] sm:$0x1]
  %v95 = vperm.slane %v94, 0
  %v96 = vmul.f32 %v93, %v95
  %97 = vst [vmem:[#allocation2 + $0x10] sm:$0xff] %v96
  %98 = vrot.lane.b32.xlu0 %v79, 1
  %v99 = vpop.permute.xlu0 %98
  %v100 = vld [vmem:[%s2 + $0x3] sm:$0x1]
  %v101 = vperm.slane %v100, 0
  %v102 = vmul.f32 %v99, %v101
  %103 = vst [vmem:[#allocation2 + $0x18] sm:$0xff] %v102
  %v104 = vld [vmem:[%s2 + $0x4] sm:$0x1]
  %v105 = vperm.slane %v104, 0
  %v106 = vmul.f32 %v79, %v105
  %107 = vst [vmem:[#allocation2 + $0x20] sm:$0xff] %v106
  %108 = vrot.lane.b32.xlu0 %v79, 127
  %v109 = vpop.permute.xlu0 %108
  %v110 = vld [vmem:[%s2 + $0x5] sm:$0x1]
  %v111 = vperm.slane %v110, 0
  %v112 = vmul.f32 %v109, %v111
  %113 = vst [vmem:[#allocation2 + $0x28] sm:$0xff] %v112
  %114 = vrot.lane.b32.xlu0 %v79, 121
  %v115 = vpop.permute.xlu0 %114
  %v116 = vld [vmem:[%s2 + $0x6] sm:$0x1]
  %v117 = vperm.slane %v116, 0
  %v118 = vmul.f32 %v115, %v117
  %119 = vst [vmem:[#allocation2 + $0x30] sm:$0xff] %v118
  %120 = vrot.lane.b32.xlu0 %v79, 120
  %v121 = vpop.permute.xlu0 %120
  %v122 = vld [vmem:[%s2 + $0x7] sm:$0x1]
  %v123 = vperm.slane %v122, 0
  %v124 = vmul.f32 %v121, %v123
  %125 = vst [vmem:[#allocation2 + $0x38] sm:$0xff] %v124
  %126 = vrot.lane.b32.xlu0 %v79, 119
  %v127 = vpop.permute.xlu0 %126
  %v128 = vld [vmem:[%s2 + $0x8] sm:$0x1]
  %v129 = vperm.slane %v128, 0
  %v130 = vmul.f32 %v127, %v129
  %131 = vst [vmem:[#allocation2 + $0x40] sm:$0xff] %v130
  %v132 = vld [vmem:[%s5] sm:$0xff]
  %v133 = vld [vmem:[#allocation2] sm:$0xff]
  %v134 = vld [vmem:[#allocation2 + $0x8] sm:$0xff]
  %v135 = vld [vmem:[#allocation2 + $0x10] sm:$0xff]
  %v136 = vld [vmem:[#allocation2 + $0x18] sm:$0xff]
  %v137 = vld [vmem:[#allocation2 + $0x20] sm:$0xff]
  %v138 = vld [vmem:[#allocation2 + $0x28] sm:$0xff]
  %v139 = vld [vmem:[#allocation2 + $0x30] sm:$0xff]
  %v140 = vld [vmem:[#allocation2 + $0x38] sm:$0xff]
  %v141 = vld [vmem:[#allocation2 + $0x40] sm:$0xff]
  %v142 = vld [vmem:[%s6] sm:$0xff]
  %144 = vset.pattern.permute.xlu0 0
  %145 = vperm.xlu0 %144, %v142
  %v146 = vpop.permute.xlu0 %145
  %vm148 = vcmask 588800
  %v150 = vsel %vm148, %v132, 0
  %152 = vmatpush.msra.mxu0 0.0
  %153 = vmatpush.msra.mxu0 0.0
  %154 = vmatpush.msra.mxu0 0.0
  %155 = vmatpush.msra.mxu0 0.0
  %156 = vmatpush.msra.mxu0 0.0
  %157 = vmatpush.msra.mxu0 0.0
  %158 = vmatpush.msra.mxu0 0.0
  %159 = vmatpush.msra.mxu0 %v141
  %160 = vmatpush.msra.mxu0 %v140
  %161 = vmatpush.msra.mxu0 %v139
  %162 = vmatpush.msra.mxu0 %v138
  %163 = vmatpush.msra.mxu0 %v137
  %164 = vmatpush.msra.mxu0 %v136
  %165 = vmatpush.msra.mxu0 %v135
  %166 = vmatpush.msra.mxu0 %v134
  %167 = vmatpush.msra.mxu0 %v133
  %168 = vmatmul.f32.gmra.mxu0 %v150
  %v169 = vpop.f32.mrf.mxu0
  %v170 = vadd.f32 %v146, %v169
  %171 = vdwg.mxu0
  %v172 = vld [vmem:[%s7] sm:$0xff]
  %v173 = vld [vmem:[%s1] sm:$0xf]
  %v174 = vld [vmem:[%s8] sm:$0xff]
  %176 = vset.pattern.permute.xlu0 0
  %177 = vperm.xlu0 %176, %v174
  %v178 = vpop.permute.xlu0 %177
  %vm180 = vcmask 31744
  %v182 = vsel %vm180, %v172, 0
  %v185 = vsel %vm54, %v173, 0
  %187 = vmatpush.msra.mxu0 0.0
  %188 = vmatpush.msra.mxu0 0.0
  %189 = vmatpush.msra.mxu0 0.0
  %190 = vmatpush.msra.mxu0 0.0
  %191 = vmatpush.msra.mxu0 0.0
  %192 = vmatpush.msra.mxu0 0.0
  %193 = vmatpush.msra.mxu0 0.0
  %194 = vmatpush.msra.mxu0 0.0
  %195 = vmatpush.msra.mxu0 0.0
  %196 = vmatpush.msra.mxu0 0.0
  %197 = vmatpush.msra.mxu0 0.0
  %198 = vmatpush.msra.mxu0 0.0
  %199 = vmatpush.msra.mxu0 0.0
  %200 = vmatpush.msra.mxu0 0.0
  %201 = vmatpush.msra.mxu0 0.0
  %202 = vmatpush.msra.mxu0 %v185
  %203 = vmatmul.f32.gmra.mxu0 %v182
  %v204 = vpop.f32.mrf.mxu0
  %v205 = vadd.f32 %v178, %v204
  %206 = vdwg.mxu0
  %v207 = vadd.f32 %v205, %v170
  %v208 = vld [vmem:[%s10] sm:$0xff]
  %v209 = vmul.f32 %v207, %v207
  %v210 = vld [vmem:[%s9] sm:$0xff]
  %212 = vset.pattern.permute.xlu0 0
  %213 = vperm.xlu0 %212, %v210
  %v214 = vpop.permute.xlu0 %213
  %vm216 = vcmask 64512
  %v218 = vsel %vm216, %v208, 0
  %220 = vmatpush.msra.mxu0 0.0
  %221 = vmatpush.msra.mxu0 0.0
  %222 = vmatpush.msra.mxu0 0.0
  %223 = vmatpush.msra.mxu0 0.0
  %224 = vmatpush.msra.mxu0 0.0
  %225 = vmatpush.msra.mxu0 0.0
  %226 = vmatpush.msra.mxu0 0.0
  %227 = vmatpush.msra.mxu0 0.0
  %228 = vmatpush.msra.mxu0 0.0
  %229 = vmatpush.msra.mxu0 0.0
  %230 = vmatpush.msra.mxu0 0.0
  %231 = vmatpush.msra.mxu0 0.0
  %232 = vmatpush.msra.mxu0 0.0
  %233 = vmatpush.msra.mxu0 0.0
  %234 = vmatpush.msra.mxu0 0.0
  %235 = vmatpush.msra.mxu0 %v209
  %236 = vmatmul.f32.gmra.mxu0 %v218
  %v237 = vpop.f32.mrf.mxu0
  %v238 = vadd.f32 %v214, %v237
  %239 = vdwg.mxu0
  %v240 = vrsqrt.pop %v238
  %v241 = vmul.f32 %v240, %v238
  %v242 = vmul.f32 %v241, %v240
  %v243 = vmul.f32 0.5, %v242
  %v244 = vsub.f32 1.5, %v243
  %v245 = vmul.f32 %v240, %v244
  %vm246 = vweird.f32 %v238
  %vm247 = vweird.f32 %v240
  %vm248 = vmor %vm246, %vm247
  %v249 = vsel %vm248, %v240, %v245
  %v250 = vmul.f32 %v207, %v249
  %251 = vst [vmem:[%s11] sm:$0xff] %v250
  // Predicated region
  $region46: #{resnet_block_s2_forward.1} parent=0 // pred_check
    _
  $region47: #{resnet_block_s2_forward.1} parent=0 // pred_check_branch
    %253 = sbr.rel (0) target = $region49
  $region48: #{resnet_block_s2_forward.1} parent=0 // pred_region
    _
  $region49: #{resnet_block_s2_forward.1} parent=0 // pred_fallthru
    _
  // Predicated region
  $region50: #{resnet_block_s2_forward.1} parent=0 // pred_check
    _
  $region51: #{resnet_block_s2_forward.1} parent=0 // pred_check_branch
    %255 = sbr.rel (0) target = $region53
  $region52: #{resnet_block_s2_forward.1} parent=0 // pred_region
    _
  $region53: #{resnet_block_s2_forward.1} parent=0 // pred_fallthru
    _

</llo_original>
